<compile_context>
chip_gen: v7x
topology: tpu7x:2x2x1
jax: 0.10.0
libtpu: 0.0.40
codegen_flags: <defaults>
</compile_context>

<pallas_src>
import jax
import jax.numpy as jnp
from jax.experimental import pallas as pl
from jax.experimental.pallas import tpu as pltpu


def _to_2tuple(v):
    if isinstance(v, (tuple, list)):
        return tuple(v)
    return (v, v)


def _round_up(v, m):
    return ((v + m - 1) // m) * m


# --------------------------------------------------------------------------
# Pallas kernel: one row-tile of  out = patches @ weight + bias
# --------------------------------------------------------------------------
def _patch_embed_kernel(p_ref, w_ref, b_ref, o_ref):
    # Single fused MXU matmul over the full K axis (weight is VMEM-resident),
    # f32 accumulation, bias folded into the epilogue — no scratch, no pl.when.
    acc = jnp.dot(p_ref[...], w_ref[...], preferred_element_type=jnp.float32)
    o_ref[...] = (acc + b_ref[...]).astype(o_ref.dtype)


def _choose_tm(M, K, E_pad, in_isz, out_isz, budget_bytes):
    """Largest lane/sublane-friendly row tile whose double-buffered footprint
    (patches tile + resident weight + output tile) fits in `budget_bytes`."""
    fixed = 2 * K * E_pad * in_isz + 2 * E_pad * 4       # weight + bias (2 bufs)
    per_row = 2 * (K * in_isz + E_pad * out_isz)         # patches + output rows
    avail = max(budget_bytes - fixed, 8 * per_row)
    tm = int(min(1024, avail // per_row))
    if tm >= M:
        return M                                         # full-dim block: always legal
    if tm >= 128:
        return (tm // 128) * 128
    align = 16 if in_isz < 4 else 8                      # bf16 sublane packing
    return max(align, (tm // align) * align)


def _projection(patches, w_flat, bias, *, compute_dtype=None):
    """(M, K) @ (K, E) + (E,) -> (M, E) in a single Pallas pass over row tiles."""
    M, K = patches.shape
    _, E = w_flat.shape
    out_dtype = patches.dtype

    # Optional bf16 operand cast (f32 accumulation stays inside the kernel).
    if compute_dtype is not None and patches.dtype != compute_dtype:
        patches = patches.astype(compute_dtype)
        w_flat = w_flat.astype(compute_dtype)
    elif w_flat.dtype != patches.dtype:
        w_flat = w_flat.astype(patches.dtype)

    # Keep the output lane axis dense (multiple of 128).  Only the *small*
    # weight/bias are ever padded; K needs no padding (blocks span full K) and
    # the big patches array is never padded or copied — the grid uses cdiv and
    # Pallas clips the edge blocks (out-of-bounds output rows are dropped).
    E_pad = E if E % 128 == 0 else _round_up(E, 128)
    if E_pad != E:
        w_flat = jnp.pad(w_flat, ((0, 0), (0, E_pad - E)))
    bias2d = bias.astype(jnp.float32).reshape(1, E)
    if E_pad != E:
        bias2d = jnp.pad(bias2d, ((0, 0), (0, E_pad - E)))

    in_isz = jnp.dtype(patches.dtype).itemsize
    out_isz = jnp.dtype(out_dtype).itemsize

    # ~40 MiB tile budget: near the HBM-roofline plateau on v5e/v6e while
    # leaving headroom inside v7x's 64 MiB physical VMEM.
    budget = 40 * 1024 * 1024
    tm = _choose_tm(M, K, E_pad, in_isz, out_isz, budget)

    footprint = (2 * tm * K * in_isz + 2 * K * E_pad * in_isz
                 + 2 * tm * E_pad * out_isz + 2 * E_pad * 4)
    vmem_limit = int(min(48 * 1024 * 1024, max(footprint + (4 << 20), 16 << 20)))

    grid = (pl.cdiv(M, tm),)

    out = pl.pallas_call(
        _patch_embed_kernel,
        out_shape=jax.ShapeDtypeStruct((M, E_pad), out_dtype),
        grid_spec=pltpu.PrefetchScalarGridSpec(
            num_scalar_prefetch=0,
            grid=grid,
            in_specs=[
                # Streaming row tile of patches (double-buffered along the grid).
                pl.BlockSpec((tm, K), lambda i: (i, 0)),
                # Full (K, E) weight: constant block index -> fetched once,
                # stays resident in VMEM across all row tiles.
                pl.BlockSpec((K, E_pad), lambda i: (0, 0)),
                # Bias, f32, resident.
                pl.BlockSpec((1, E_pad), lambda i: (0, 0)),
            ],
            out_specs=pl.BlockSpec((tm, E_pad), lambda i: (i, 0)),
        ),
        compiler_params=pltpu.CompilerParams(
            # Single independent M axis -> megacore sharding on v7x.
            dimension_semantics=("parallel",),
            vmem_limit_bytes=vmem_limit,
        ),
    )(patches, w_flat, bias2d)

    return out if E_pad == E else out[:, :E]


# --------------------------------------------------------------------------
# Functional forward
# --------------------------------------------------------------------------
def patch_embed_forward(x, weight, bias, tubelet_size, patch_size, *,
                        compute_dtype=None):
    """x: (B, C, T, H, W); weight: (E, C, t, ph, pw); bias: (E,) -> (B, N, E)."""
    B, C, T, H, W = x.shape
    t = int(tubelet_size)
    ph, pw = patch_size
    E = weight.shape[0]
    assert H % ph == 0 and W % pw == 0, (
        f"Input image size({H},{W}) must be divisible by patch size ({ph},{pw})"
    )
    assert T % t == 0

    Tt, Hh, Ww = T // t, H // ph, W // pw
    N = Tt * Hh * Ww
    K = C * t * ph * pw

    # Patchify (pure layout change; the non-overlapping Conv3d is exactly
    # a patch extraction followed by a dense K -> E projection).
    # TODO(synk): for large inputs this XLA transpose is the largest remaining
    # HBM consumer; fusing the patch gather into the Pallas kernel (manual DMA
    # of (ph, W) slabs + on-chip reshuffle) would remove one full read+write of x.
    patches = x.reshape(B, C, Tt, t, Hh, ph, Ww, pw)
    patches = patches.transpose(0, 2, 4, 6, 1, 3, 5, 7).reshape(B * N, K)

    # Conv3d weight (E, C, t, ph, pw) flattened in the same (C, t, ph, pw) order.
    w_flat = weight.reshape(E, K).T  # (K, E)

    out = _projection(patches, w_flat, bias, compute_dtype=compute_dtype)
    return out.reshape(B, N, E)


# --------------------------------------------------------------------------
# Module wrapper mirroring the PyTorch PatchEmbed
# --------------------------------------------------------------------------
class PatchEmbed:
    """Image/video to Patch Embedding — JAX/Pallas port of the PyTorch module."""

    def __init__(self, img_size=224, patch_size=(16, 16), in_chans=3,
                 embed_dim=768, num_frames=16, tubelet_size=2,
                 *, key, dtype=jnp.float32, compute_dtype=None):
        img_size = _to_2tuple(img_size)
        patch_size = _to_2tuple(patch_size)
        self.tubelet_size = int(tubelet_size)
        if num_frames is not None:
            self.num_frames = int(num_frames)
            self.num_patches = (img_size[1] // patch_size[1]) * \
                               (img_size[0] // patch_size[0]) * \
                               (self.num_frames // self.tubelet_size)
        else:
            self.num_frames = None
            self.num_patches = None
        self.img_size = img_size
        self.patch_size = patch_size
        self.in_chans = in_chans
        self.embed_dim = embed_dim
        self.compute_dtype = compute_dtype

        k_w, k_b = jax.random.split(key)
        w_shape = (embed_dim, in_chans, self.tubelet_size, patch_size[0], patch_size[1])
        self.weight = (jax.random.normal(k_w, w_shape, dtype=jnp.float32) * 0.02).astype(dtype)
        # Bias is kept f32 (tiny, resident in VMEM inside the kernel).
        self.bias = jax.random.normal(k_b, (embed_dim,), dtype=jnp.float32) * 0.02

    def __call__(self, x, compute_dtype=None, **kwargs):
        cd = compute_dtype if compute_dtype is not None else self.compute_dtype
        return patch_embed_forward(x, self.weight, self.bias,
                                   self.tubelet_size, self.patch_size,
                                   compute_dtype=cd)


if __name__ == "__main__":
    key = jax.random.PRNGKey(0)
    k_x, k_params = jax.random.split(key)

    # Small shapes consistent with the module: batch=2, channels=3,
    # frames=4 (tubelet 2), 32x32 image with 16x16 patches, embed_dim=128.
    B, C, T, H, W = 2, 3, 4, 32, 32
    module = PatchEmbed(img_size=32, patch_size=(16, 16), in_chans=C,
                        embed_dim=128, num_frames=T, tubelet_size=2, key=k_params)

    x = jax.random.normal(k_x, (B, C, T, H, W), dtype=jnp.float32)

    out = jax.block_until_ready(module(x))
    assert out.shape == (B, module.num_patches, module.embed_dim), out.shape
    assert out.dtype == x.dtype

    # Reference: the actual Conv3d (stride == kernel) + flatten + transpose.
    ref = jax.lax.conv_general_dilated(
        x, module.weight,
        window_strides=(module.tubelet_size, *module.patch_size),
        padding="VALID",
        dimension_numbers=("NCDHW", "OIDHW", "NCDHW"),
        precision=jax.lax.Precision.HIGHEST,
    )
    ref = ref + module.bias[None, :, None, None, None]
    ref = ref.reshape(B, module.embed_dim, -1).transpose(0, 2, 1)

    assert jnp.allclose(out, ref, rtol=1e-3, atol=1e-3), (
        float(jnp.max(jnp.abs(out - ref)))
    )

    # bf16-operand fast path (recommended on v5e/v6e/v7x): bf16 through the MXU
    # with f32 accumulation; compared against the f32 reference with a looser
    # tolerance appropriate for bf16 operands.
    out_bf16 = jax.block_until_ready(module(x, compute_dtype=jnp.bfloat16))
    assert out_bf16.shape == out.shape and out_bf16.dtype == x.dtype
    assert jnp.allclose(out_bf16, ref, rtol=5e-2, atol=5e-2), (
        float(jnp.max(jnp.abs(out_bf16 - ref)))
    )

    print("KERNEL_OK")
</pallas_src>

<mosaic_0001>
module attributes {stable_mosaic.version = 11 : i64} {
  func.func @_patch_embed_kernel(%arg0: i32, %arg1: memref<16x1536xf32, #tpu.memory_space<vmem>>, %arg2: memref<1536x128xf32, #tpu.memory_space<vmem>>, %arg3: memref<1x128xf32, #tpu.memory_space<vmem>>, %arg4: memref<16x128xf32, #tpu.memory_space<vmem>>) attributes {dimension_semantics = [#tpu.dimension_semantics<parallel>], iteration_bounds = array<i64: 1>, scalar_prefetch = 0 : i64, scratch_operands = 0 : i64, tpu.core_type = #tpu.core_type<tc>, window_params = [{transform_indices = @transform_0, window_bounds = array<i64: 16, 1536>}, {pipeline_mode = #tpu.pipeline_mode<synchronous>, transform_indices = @transform_1, window_bounds = array<i64: 1536, 128>}, {pipeline_mode = #tpu.pipeline_mode<synchronous>, transform_indices = @transform_2, window_bounds = array<i64: 1, 128>}, {transform_indices = @transform_3, window_bounds = array<i64: 16, 128>}]} {
    %c0 = arith.constant 0 : index
    %c0_0 = arith.constant 0 : index
    %0 = vector.load %arg1[%c0, %c0_0] : memref<16x1536xf32, #tpu.memory_space<vmem>>, vector<16x1536xf32>
    %c0_1 = arith.constant 0 : index
    %c0_2 = arith.constant 0 : index
    %1 = vector.load %arg2[%c0_1, %c0_2] : memref<1536x128xf32, #tpu.memory_space<vmem>>, vector<1536x128xf32>
    %cst = arith.constant dense<0.000000e+00> : vector<16x128xf32>
    %2 = tpu.matmul %0, %1, %cst {dimension_numbers = #tpu.dot_dimension_numbers<[1], [0], [0], [1], [0, 0, 1, 1], [], []>} : vector<16x1536xf32>, vector<1536x128xf32>, vector<16x128xf32> -> vector<16x128xf32>
    %c0_3 = arith.constant 0 : index
    %c0_4 = arith.constant 0 : index
    %3 = vector.load %arg3[%c0_3, %c0_4] : memref<1x128xf32, #tpu.memory_space<vmem>>, vector<1x128xf32>
    %4 = vector.broadcast %3 : vector<1x128xf32> to vector<16x128xf32>
    %5 = arith.addf %2, %4 : vector<16x128xf32>
    %c0_5 = arith.constant 0 : index
    %c0_6 = arith.constant 0 : index
    %6 = vector.load %arg4[%c0_5, %c0_6] : memref<16x128xf32, #tpu.memory_space<vmem>>, vector<16x128xf32>
    tpu.vector_store %arg4[%c0_5, %c0_6], %5 {strides = array<i32>} : memref<16x128xf32, #tpu.memory_space<vmem>>, vector<16x128xf32>,
    return
  }
  func.func @transform_0(%arg0: i32) -> (i32, i32) {
    %c0_i32 = arith.constant 0 : i32
    %c0_i32_0 = arith.constant 0 : i32
    return %arg0, %c0_i32 : i32, i32
  }
  func.func @transform_1(%arg0: i32) -> (i32, i32) {
    %c0_i32 = arith.constant 0 : i32
    %c0_i32_0 = arith.constant 0 : i32
    %c0_i32_1 = arith.constant 0 : i32
    return %c0_i32, %c0_i32_0 : i32, i32
  }
  func.func @transform_2(%arg0: i32) -> (i32, i32) {
    %c0_i32 = arith.constant 0 : i32
    %c0_i32_0 = arith.constant 0 : i32
    %c0_i32_1 = arith.constant 0 : i32
    return %c0_i32, %c0_i32_0 : i32, i32
  }
  func.func @transform_3(%arg0: i32) -> (i32, i32) {
    %c0_i32 = arith.constant 0 : i32
    %c0_i32_0 = arith.constant 0 : i32
    return %arg0, %c0_i32 : i32, i32
  }
}

</mosaic_0001>

<llo_original>
// kernel: tpu_custom_call.1
$region0: #{tpu_custom_call.1}
  #allocation0 [shape = 'u32[]', space=smem, size = 0x4, offset = 0x4, fixed_abs, tag = 'smem constant byte address 0x4 - core index']
  #allocation1 [shape = 'u32[144,128]{1,0:T(1,128)}', space=vmem, size = 0x12000, scoped, tag = 'internal scratch']
  %s0 = inlined_call_operand.hbm [shape: f32[16,1536], index: 0, kind: input, shape index: {}]
  %s1 = inlined_call_operand.hbm [shape: f32[1536,128], index: 1, kind: input, shape index: {}]
  %s2 = inlined_call_operand.vmem [shape: f32[1,128], index: 2, kind: input, shape index: {}]
  %s3 = inlined_call_operand.hbm [shape: f32[16,128], index: 3, kind: output, shape index: {}]
  %s4 = sld [smem:[#allocation0]]
  $region30: #{tpu_custom_call.1} parent=0
    _
  %s6 = ssub.s32 1, %s4
  %s7 = scalar_select 0, %s6, %s4
  $region1: #{tpu_custom_call.1} parent=0
    #allocation2 [shape = 'u8[98304]{0}', space=vmem, size = 0x18000, scoped, tag = 'input window, operand 0, single buffered']
    #allocation3 [shape = 's32[1]{0}', space=sflag, size = 0x4, scoped, tag = 'scoped memory for tpu_custom_call.1']
    #allocation4 [shape = 's32[1]{0}', space=sflag, size = 0x4, scoped, tag = 'scoped memory for tpu_custom_call.1']
    #allocation5 [shape = 'u8[786432]{0}', space=vmem, size = 0xc0000, scoped, tag = 'input window, operand 1, single buffered']
    #allocation6 [shape = 's32[1]{0}', space=sflag, size = 0x4, scoped, tag = 'scoped memory for tpu_custom_call.1']
    #allocation7 [shape = 'u8[8192]{0}', space=vmem, size = 0x2000, scoped, tag = 'output window, operand 0, single buffered']
    %8 = vsyncpa [#allocation3], 0
    %9 = vsyncpa [#allocation6], 0
    %10 = vsyncpa [#allocation4], 0
    // Predicated region
    $region2: #{tpu_custom_call.1} parent=1 // pred_check
      _
    $region3: #{tpu_custom_call.1} parent=1 // pred_check_branch
      %12 = sbr.rel (0) target = $region5
    $region4: #{tpu_custom_call.1} parent=1 // pred_region
      %s14 = ssub.s32 3072, 3072
      %15 = vsyncadd [#allocation3], %s14
      %s16 = sshll.u32 [#allocation2], 4
      %s17 = int_to_ptr.vmem [resolvable:$true] %s16
      %22 = dma.hbm_to_vmem [thread:$0]  %s0, 3072, %s17, [#allocation3], 1536, 1536, 96
    $region5: #{tpu_custom_call.1} parent=1 // pred_fallthru
      _
    // Predicated region
    $region6: #{tpu_custom_call.1} parent=1 // pred_check
      _
    $region7: #{tpu_custom_call.1} parent=1 // pred_check_branch
      %24 = sbr.rel (0) target = $region9
    $region8: #{tpu_custom_call.1} parent=1 // pred_region
      %s26 = ssub.s32 24576, 24576
      %27 = vsyncadd [#allocation6], %s26
      %s28 = sshll.u32 [#allocation5], 4
      %s29 = int_to_ptr.vmem [resolvable:$true] %s28
      %34 = dma.hbm_to_vmem [thread:$0]  %s1, 24576, %s29, [#allocation6], 128, 128, 8
    $region9: #{tpu_custom_call.1} parent=1 // pred_fallthru
      _
    // Predicated region
    $region10: #{tpu_custom_call.1} parent=1 // pred_check
      _
    $region11: #{tpu_custom_call.1} parent=1 // pred_check_branch
      %36 = sbr.rel (0) target = $region13
    $region12: #{tpu_custom_call.1} parent=1 // pred_region
      _
    $region13: #{tpu_custom_call.1} parent=1 // pred_fallthru
      _
    // Predicated region
    $region14: #{tpu_custom_call.1} parent=1 // pred_check
      _
    $region15: #{tpu_custom_call.1} parent=1 // pred_check_branch
      %38 = sbr.rel (0) target = $region17
    $region16: #{tpu_custom_call.1} parent=1 // pred_region
      %39 = dma.done [#allocation3], 3072
    $region17: #{tpu_custom_call.1} parent=1 // pred_fallthru
      _
    // Predicated region
    $region18: #{tpu_custom_call.1} parent=1 // pred_check
      _
    $region19: #{tpu_custom_call.1} parent=1 // pred_check_branch
      %41 = sbr.rel (0) target = $region21
    $region20: #{tpu_custom_call.1} parent=1 // pred_region
      %42 = dma.done [#allocation6], 24576
    $region21: #{tpu_custom_call.1} parent=1 // pred_fallthru
      _
    %v43 = vld [vmem:[#allocation2] sm:$0xff]
    %v44 = vld [vmem:[#allocation2 + $0x8] sm:$0xff]
    %v45 = vld [vmem:[#allocation2 + $0x10] sm:$0xff]
    %v46 = vld [vmem:[#allocation2 + $0x18] sm:$0xff]
    %v47 = vld [vmem:[#allocation2 + $0x20] sm:$0xff]
    %v48 = vld [vmem:[#allocation2 + $0x28] sm:$0xff]
    %v49 = vld [vmem:[#allocation2 + $0x30] sm:$0xff]
    %v50 = vld [vmem:[#allocation2 + $0x38] sm:$0xff]
    %v51 = vld [vmem:[#allocation2 + $0x40] sm:$0xff]
    %v52 = vld [vmem:[#allocation2 + $0x48] sm:$0xff]
    %v53 = vld [vmem:[#allocation2 + $0x50] sm:$0xff]
    %v54 = vld [vmem:[#allocation2 + $0x58] sm:$0xff]
    %v55 = vld [vmem:[#allocation2 + $0x60] sm:$0xff]
    %v56 = vld [vmem:[#allocation2 + $0x68] sm:$0xff]
    %v57 = vld [vmem:[#allocation2 + $0x70] sm:$0xff]
    %v58 = vld [vmem:[#allocation2 + $0x78] sm:$0xff]
    %v59 = vld [vmem:[#allocation2 + $0x80] sm:$0xff]
    %v60 = vld [vmem:[#allocation2 + $0x88] sm:$0xff]
    %v61 = vld [vmem:[#allocation2 + $0x90] sm:$0xff]
    %v62 = vld [vmem:[#allocation2 + $0x98] sm:$0xff]
    %v63 = vld [vmem:[#allocation2 + $0xa0] sm:$0xff]
    %v64 = vld [vmem:[#allocation2 + $0xa8] sm:$0xff]
    %v65 = vld [vmem:[#allocation2 + $0xb0] sm:$0xff]
    %v66 = vld [vmem:[#allocation2 + $0xb8] sm:$0xff]
    %v67 = vld [vmem:[#allocation5] sm:$0xff]
    %v68 = vld [vmem:[#allocation5 + $0x8] sm:$0xff]
    %v69 = vld [vmem:[#allocation5 + $0x10] sm:$0xff]
    %v70 = vld [vmem:[#allocation5 + $0x18] sm:$0xff]
    %v71 = vld [vmem:[#allocation5 + $0x20] sm:$0xff]
    %v72 = vld [vmem:[#allocation5 + $0x28] sm:$0xff]
    %v73 = vld [vmem:[#allocation5 + $0x30] sm:$0xff]
    %v74 = vld [vmem:[#allocation5 + $0x38] sm:$0xff]
    %v75 = vld [vmem:[#allocation5 + $0x40] sm:$0xff]
    %v76 = vld [vmem:[#allocation5 + $0x48] sm:$0xff]
    %v77 = vld [vmem:[#allocation5 + $0x50] sm:$0xff]
    %v78 = vld [vmem:[#allocation5 + $0x58] sm:$0xff]
    %v79 = vld [vmem:[#allocation5 + $0x60] sm:$0xff]
    %v80 = vld [vmem:[#allocation5 + $0x68] sm:$0xff]
    %v81 = vld [vmem:[#allocation5 + $0x70] sm:$0xff]
    %v82 = vld [vmem:[#allocation5 + $0x78] sm:$0xff]
    %v83 = vld [vmem:[#allocation5 + $0x80] sm:$0xff]
    %v84 = vld [vmem:[#allocation5 + $0x88] sm:$0xff]
    %v85 = vld [vmem:[#allocation5 + $0x90] sm:$0xff]
    %v86 = vld [vmem:[#allocation5 + $0x98] sm:$0xff]
    %v87 = vld [vmem:[#allocation5 + $0xa0] sm:$0xff]
    %v88 = vld [vmem:[#allocation5 + $0xa8] sm:$0xff]
    %v89 = vld [vmem:[#allocation5 + $0xb0] sm:$0xff]
    %v90 = vld [vmem:[#allocation5 + $0xb8] sm:$0xff]
    %v91 = vld [vmem:[#allocation5 + $0xc0] sm:$0xff]
    %v92 = vld [vmem:[#allocation5 + $0xc8] sm:$0xff]
    %v93 = vld [vmem:[#allocation5 + $0xd0] sm:$0xff]
    %v94 = vld [vmem:[#allocation5 + $0xd8] sm:$0xff]
    %v95 = vld [vmem:[#allocation5 + $0xe0] sm:$0xff]
    %v96 = vld [vmem:[#allocation5 + $0xe8] sm:$0xff]
    %v97 = vld [vmem:[#allocation5 + $0xf0] sm:$0xff]
    %v98 = vld [vmem:[#allocation5 + $0xf8] sm:$0xff]
    %v99 = vld [vmem:[#allocation5 + $0x100] sm:$0xff]
    %v100 = vld [vmem:[#allocation5 + $0x108] sm:$0xff]
    %v101 = vld [vmem:[#allocation5 + $0x110] sm:$0xff]
    %v102 = vld [vmem:[#allocation5 + $0x118] sm:$0xff]
    %v103 = vld [vmem:[#allocation5 + $0x120] sm:$0xff]
    %v104 = vld [vmem:[#allocation5 + $0x128] sm:$0xff]
    %v105 = vld [vmem:[#allocation5 + $0x130] sm:$0xff]
    %v106 = vld [vmem:[#allocation5 + $0x138] sm:$0xff]
    %v107 = vld [vmem:[#allocation5 + $0x140] sm:$0xff]
    %v108 = vld [vmem:[#allocation5 + $0x148] sm:$0xff]
    %v109 = vld [vmem:[#allocation5 + $0x150] sm:$0xff]
    %v110 = vld [vmem:[#allocation5 + $0x158] sm:$0xff]
    %v111 = vld [vmem:[#allocation5 + $0x160] sm:$0xff]
    %v112 = vld [vmem:[#allocation5 + $0x168] sm:$0xff]
    %v113 = vld [vmem:[#allocation5 + $0x170] sm:$0xff]
    %v114 = vld [vmem:[#allocation5 + $0x178] sm:$0xff]
    %v115 = vld [vmem:[#allocation5 + $0x180] sm:$0xff]
    %v116 = vld [vmem:[#allocation5 + $0x188] sm:$0xff]
    %v117 = vld [vmem:[#allocation5 + $0x190] sm:$0xff]
    %v118 = vld [vmem:[#allocation5 + $0x198] sm:$0xff]
    %v119 = vld [vmem:[#allocation5 + $0x1a0] sm:$0xff]
    %v120 = vld [vmem:[#allocation5 + $0x1a8] sm:$0xff]
    %v121 = vld [vmem:[#allocation5 + $0x1b0] sm:$0xff]
    %v122 = vld [vmem:[#allocation5 + $0x1b8] sm:$0xff]
    %v123 = vld [vmem:[#allocation5 + $0x1c0] sm:$0xff]
    %v124 = vld [vmem:[#allocation5 + $0x1c8] sm:$0xff]
    %v125 = vld [vmem:[#allocation5 + $0x1d0] sm:$0xff]
    %v126 = vld [vmem:[#allocation5 + $0x1d8] sm:$0xff]
    %v127 = vld [vmem:[#allocation5 + $0x1e0] sm:$0xff]
    %v128 = vld [vmem:[#allocation5 + $0x1e8] sm:$0xff]
    %v129 = vld [vmem:[#allocation5 + $0x1f0] sm:$0xff]
    %v130 = vld [vmem:[#allocation5 + $0x1f8] sm:$0xff]
    %v131 = vld [vmem:[#allocation5 + $0x200] sm:$0xff]
    %v132 = vld [vmem:[#allocation5 + $0x208] sm:$0xff]
    %v133 = vld [vmem:[#allocation5 + $0x210] sm:$0xff]
    %v134 = vld [vmem:[#allocation5 + $0x218] sm:$0xff]
    %v135 = vld [vmem:[#allocation5 + $0x220] sm:$0xff]
    %v136 = vld [vmem:[#allocation5 + $0x228] sm:$0xff]
    %v137 = vld [vmem:[#allocation5 + $0x230] sm:$0xff]
    %v138 = vld [vmem:[#allocation5 + $0x238] sm:$0xff]
    %v139 = vld [vmem:[#allocation5 + $0x240] sm:$0xff]
    %v140 = vld [vmem:[#allocation5 + $0x248] sm:$0xff]
    %v141 = vld [vmem:[#allocation5 + $0x250] sm:$0xff]
    %v142 = vld [vmem:[#allocation5 + $0x258] sm:$0xff]
    %v143 = vld [vmem:[#allocation5 + $0x260] sm:$0xff]
    %v144 = vld [vmem:[#allocation5 + $0x268] sm:$0xff]
    %v145 = vld [vmem:[#allocation5 + $0x270] sm:$0xff]
    %v146 = vld [vmem:[#allocation5 + $0x278] sm:$0xff]
    %v147 = vld [vmem:[#allocation5 + $0x280] sm:$0xff]
    %v148 = vld [vmem:[#allocation5 + $0x288] sm:$0xff]
    %v149 = vld [vmem:[#allocation5 + $0x290] sm:$0xff]
    %v150 = vld [vmem:[#allocation5 + $0x298] sm:$0xff]
    %v151 = vld [vmem:[#allocation5 + $0x2a0] sm:$0xff]
    %v152 = vld [vmem:[#allocation5 + $0x2a8] sm:$0xff]
    %v153 = vld [vmem:[#allocation5 + $0x2b0] sm:$0xff]
    %v154 = vld [vmem:[#allocation5 + $0x2b8] sm:$0xff]
    %v155 = vld [vmem:[#allocation5 + $0x2c0] sm:$0xff]
    %v156 = vld [vmem:[#allocation5 + $0x2c8] sm:$0xff]
    %v157 = vld [vmem:[#allocation5 + $0x2d0] sm:$0xff]
    %v158 = vld [vmem:[#allocation5 + $0x2d8] sm:$0xff]
    %v159 = vld [vmem:[#allocation5 + $0x2e0] sm:$0xff]
    %v160 = vld [vmem:[#allocation5 + $0x2e8] sm:$0xff]
    %v161 = vld [vmem:[#allocation5 + $0x2f0] sm:$0xff]
    %v162 = vld [vmem:[#allocation5 + $0x2f8] sm:$0xff]
    %v163 = vld [vmem:[#allocation5 + $0x300] sm:$0xff]
    %v164 = vld [vmem:[#allocation5 + $0x308] sm:$0xff]
    %v165 = vld [vmem:[#allocation5 + $0x310] sm:$0xff]
    %v166 = vld [vmem:[#allocation5 + $0x318] sm:$0xff]
    %v167 = vld [vmem:[#allocation5 + $0x320] sm:$0xff]
    %v168 = vld [vmem:[#allocation5 + $0x328] sm:$0xff]
    %v169 = vld [vmem:[#allocation5 + $0x330] sm:$0xff]
    %v170 = vld [vmem:[#allocation5 + $0x338] sm:$0xff]
    %v171 = vld [vmem:[#allocation5 + $0x340] sm:$0xff]
    %v172 = vld [vmem:[#allocation5 + $0x348] sm:$0xff]
    %v173 = vld [vmem:[#allocation5 + $0x350] sm:$0xff]
    %v174 = vld [vmem:[#allocation5 + $0x358] sm:$0xff]
    %v175 = vld [vmem:[#allocation5 + $0x360] sm:$0xff]
    %v176 = vld [vmem:[#allocation5 + $0x368] sm:$0xff]
    %v177 = vld [vmem:[#allocation5 + $0x370] sm:$0xff]
    %v178 = vld [vmem:[#allocation5 + $0x378] sm:$0xff]
    %v179 = vld [vmem:[#allocation5 + $0x380] sm:$0xff]
    %v180 = vld [vmem:[#allocation5 + $0x388] sm:$0xff]
    %v181 = vld [vmem:[#allocation5 + $0x390] sm:$0xff]
    %v182 = vld [vmem:[#allocation5 + $0x398] sm:$0xff]
    %v183 = vld [vmem:[#allocation5 + $0x3a0] sm:$0xff]
    %v184 = vld [vmem:[#allocation5 + $0x3a8] sm:$0xff]
    %v185 = vld [vmem:[#allocation5 + $0x3b0] sm:$0xff]
    %v186 = vld [vmem:[#allocation5 + $0x3b8] sm:$0xff]
    %v187 = vld [vmem:[#allocation5 + $0x3c0] sm:$0xff]
    %v188 = vld [vmem:[#allocation5 + $0x3c8] sm:$0xff]
    %v189 = vld [vmem:[#allocation5 + $0x3d0] sm:$0xff]
    %v190 = vld [vmem:[#allocation5 + $0x3d8] sm:$0xff]
    %v191 = vld [vmem:[#allocation5 + $0x3e0] sm:$0xff]
    %v192 = vld [vmem:[#allocation5 + $0x3e8] sm:$0xff]
    %v193 = vld [vmem:[#allocation5 + $0x3f0] sm:$0xff]
    %v194 = vld [vmem:[#allocation5 + $0x3f8] sm:$0xff]
    %v195 = vld [vmem:[#allocation5 + $0x400] sm:$0xff]
    %v196 = vld [vmem:[#allocation5 + $0x408] sm:$0xff]
    %v197 = vld [vmem:[#allocation5 + $0x410] sm:$0xff]
    %v198 = vld [vmem:[#allocation5 + $0x418] sm:$0xff]
    %v199 = vld [vmem:[#allocation5 + $0x420] sm:$0xff]
    %v200 = vld [vmem:[#allocation5 + $0x428] sm:$0xff]
    %v201 = vld [vmem:[#allocation5 + $0x430] sm:$0xff]
    %v202 = vld [vmem:[#allocation5 + $0x438] sm:$0xff]
    %v203 = vld [vmem:[#allocation5 + $0x440] sm:$0xff]
    %v204 = vld [vmem:[#allocation5 + $0x448] sm:$0xff]
    %v205 = vld [vmem:[#allocation5 + $0x450] sm:$0xff]
    %v206 = vld [vmem:[#allocation5 + $0x458] sm:$0xff]
    %v207 = vld [vmem:[#allocation5 + $0x460] sm:$0xff]
    %v208 = vld [vmem:[#allocation5 + $0x468] sm:$0xff]
    %v209 = vld [vmem:[#allocation5 + $0x470] sm:$0xff]
    %v210 = vld [vmem:[#allocation5 + $0x478] sm:$0xff]
    %v211 = vld [vmem:[#allocation5 + $0x480] sm:$0xff]
    %v212 = vld [vmem:[#allocation5 + $0x488] sm:$0xff]
    %v213 = vld [vmem:[#allocation5 + $0x490] sm:$0xff]
    %v214 = vld [vmem:[#allocation5 + $0x498] sm:$0xff]
    %v215 = vld [vmem:[#allocation5 + $0x4a0] sm:$0xff]
    %v216 = vld [vmem:[#allocation5 + $0x4a8] sm:$0xff]
    %v217 = vld [vmem:[#allocation5 + $0x4b0] sm:$0xff]
    %v218 = vld [vmem:[#allocation5 + $0x4b8] sm:$0xff]
    %v219 = vld [vmem:[#allocation5 + $0x4c0] sm:$0xff]
    %v220 = vld [vmem:[#allocation5 + $0x4c8] sm:$0xff]
    %v221 = vld [vmem:[#allocation5 + $0x4d0] sm:$0xff]
    %v222 = vld [vmem:[#allocation5 + $0x4d8] sm:$0xff]
    %v223 = vld [vmem:[#allocation5 + $0x4e0] sm:$0xff]
    %v224 = vld [vmem:[#allocation5 + $0x4e8] sm:$0xff]
    %v225 = vld [vmem:[#allocation5 + $0x4f0] sm:$0xff]
    %v226 = vld [vmem:[#allocation5 + $0x4f8] sm:$0xff]
    %v227 = vld [vmem:[#allocation5 + $0x500] sm:$0xff]
    %v228 = vld [vmem:[#allocation5 + $0x508] sm:$0xff]
    %v229 = vld [vmem:[#allocation5 + $0x510] sm:$0xff]
    %v230 = vld [vmem:[#allocation5 + $0x518] sm:$0xff]
    %v231 = vld [vmem:[#allocation5 + $0x520] sm:$0xff]
    %v232 = vld [vmem:[#allocation5 + $0x528] sm:$0xff]
    %v233 = vld [vmem:[#allocation5 + $0x530] sm:$0xff]
    %v234 = vld [vmem:[#allocation5 + $0x538] sm:$0xff]
    %v235 = vld [vmem:[#allocation5 + $0x540] sm:$0xff]
    %v236 = vld [vmem:[#allocation5 + $0x548] sm:$0xff]
    %v237 = vld [vmem:[#allocation5 + $0x550] sm:$0xff]
    %v238 = vld [vmem:[#allocation5 + $0x558] sm:$0xff]
    %v239 = vld [vmem:[#allocation5 + $0x560] sm:$0xff]
    %v240 = vld [vmem:[#allocation5 + $0x568] sm:$0xff]
    %v241 = vld [vmem:[#allocation5 + $0x570] sm:$0xff]
    %v242 = vld [vmem:[#allocation5 + $0x578] sm:$0xff]
    %v243 = vld [vmem:[#allocation5 + $0x580] sm:$0xff]
    %v244 = vld [vmem:[#allocation5 + $0x588] sm:$0xff]
    %v245 = vld [vmem:[#allocation5 + $0x590] sm:$0xff]
    %v246 = vld [vmem:[#allocation5 + $0x598] sm:$0xff]
    %v247 = vld [vmem:[#allocation5 + $0x5a0] sm:$0xff]
    %v248 = vld [vmem:[#allocation5 + $0x5a8] sm:$0xff]
    %v249 = vld [vmem:[#allocation5 + $0x5b0] sm:$0xff]
    %v250 = vld [vmem:[#allocation5 + $0x5b8] sm:$0xff]
    %v251 = vld [vmem:[#allocation5 + $0x5c0] sm:$0xff]
    %v252 = vld [vmem:[#allocation5 + $0x5c8] sm:$0xff]
    %v253 = vld [vmem:[#allocation5 + $0x5d0] sm:$0xff]
    %v254 = vld [vmem:[#allocation5 + $0x5d8] sm:$0xff]
    %v255 = vld [vmem:[#allocation5 + $0x5e0] sm:$0xff]
    %v256 = vld [vmem:[#allocation5 + $0x5e8] sm:$0xff]
    %v257 = vld [vmem:[#allocation5 + $0x5f0] sm:$0xff]
    %v258 = vld [vmem:[#allocation5 + $0x5f8] sm:$0xff]
    %v259 = vld [vmem:[%s2] sm:$0x1]
    %v261 = vlaneseq
    %v262 = vshrl.u32 %v261, 7
    %v263 = vsub.s32 0, %v262
    %v264 = vrot.slane %v259, %v263
    %266 = vmatprep.subr.mxu0 0.0
    %267 = vmatpush1.msra.mxu0 %v67
    %268 = vmatprep.subr.mxu0 0.0
    %269 = vmatpush1.msra.mxu0 %v68
    %270 = vmatprep.subr.mxu0 0.0
    %271 = vmatpush1.msra.mxu0 %v69
    %272 = vmatprep.subr.mxu0 0.0
    %273 = vmatpush1.msra.mxu0 %v70
    %274 = vmatprep.subr.mxu0 0.0
    %275 = vmatpush1.msra.mxu0 %v71
    %276 = vmatprep.subr.mxu0 0.0
    %277 = vmatpush1.msra.mxu0 %v72
    %278 = vmatprep.subr.mxu0 0.0
    %279 = vmatpush1.msra.mxu0 %v73
    %280 = vmatprep.subr.mxu0 0.0
    %281 = vmatpush1.msra.mxu0 %v74
    %282 = vmatprep.subr.mxu0 0.0
    %283 = vmatpush1.msra.mxu0 %v75
    %284 = vmatprep.subr.mxu0 0.0
    %285 = vmatpush1.msra.mxu0 %v76
    %286 = vmatprep.subr.mxu0 0.0
    %287 = vmatpush1.msra.mxu0 %v77
    %288 = vmatprep.subr.mxu0 0.0
    %289 = vmatpush1.msra.mxu0 %v78
    %290 = vmatprep.subr.mxu0 0.0
    %291 = vmatpush1.msra.mxu0 %v79
    %292 = vmatprep.subr.mxu0 0.0
    %293 = vmatpush1.msra.mxu0 %v80
    %294 = vmatprep.subr.mxu0 0.0
    %295 = vmatpush1.msra.mxu0 %v81
    %296 = vmatprep.subr.mxu0 0.0
    %297 = vmatpush1.msra.mxu0 %v82
    %298 = vmatprep.subr.mxu0 0.0
    %299 = vmatpush1.msra.mxu0 %v83
    %300 = vmatprep.subr.mxu0 0.0
    %301 = vmatpush1.msra.mxu0 %v84
    %302 = vmatprep.subr.mxu0 0.0
    %303 = vmatpush1.msra.mxu0 %v85
    %304 = vmatprep.subr.mxu0 0.0
    %305 = vmatpush1.msra.mxu0 %v86
    %306 = vmatprep.subr.mxu0 0.0
    %307 = vmatpush1.msra.mxu0 %v87
    %308 = vmatprep.subr.mxu0 0.0
    %309 = vmatpush1.msra.mxu0 %v88
    %310 = vmatprep.subr.mxu0 0.0
    %311 = vmatpush1.msra.mxu0 %v89
    %312 = vmatprep.subr.mxu0 0.0
    %313 = vmatpush1.msra.mxu0 %v90
    %314 = vmatprep.subr.mxu0 0.0
    %315 = vmatpush1.msra.mxu0 %v91
    %316 = vmatprep.subr.mxu0 0.0
    %317 = vmatpush1.msra.mxu0 %v92
    %318 = vmatprep.subr.mxu0 0.0
    %319 = vmatpush1.msra.mxu0 %v93
    %320 = vmatprep.subr.mxu0 0.0
    %321 = vmatpush1.msra.mxu0 %v94
    %322 = vmatprep.subr.mxu0 0.0
    %323 = vmatpush1.msra.mxu0 %v95
    %324 = vmatprep.subr.mxu0 0.0
    %325 = vmatpush1.msra.mxu0 %v96
    %326 = vmatprep.subr.mxu0 0.0
    %327 = vmatpush1.msra.mxu0 %v97
    %328 = vmatprep.subr.mxu0 0.0
    %329 = vmatpush1.msra.mxu0 %v98
    %330 = vmatprep.mubr.f32.mxu0 %v44
    %331 = vmatmul.mubr.f32.gmra.mrb[0].mxu0 %v43
    %v332 = vpop.f32.mrb[0].mxu0
    %v333 = vadd.f32 %v264, %v332
    %v334 = vpop.f32.mrb[0].mxu0
    %335 = vmatprep.mubr.f32.mxu0 %v56
    %336 = vmatmul.mubr.f32.gmra.mrb[0].mxu0 %v55
    %v337 = vpop.f32.mrb[0].mxu0
    %v338 = vadd.f32 %v264, %v337
    %v339 = vpop.f32.mrb[0].mxu0
    %340 = vdwg.mxu0
    %341 = vmatprep.subr.mxu0 0.0
    %342 = vmatpush1.msra.mxu0 %v99
    %343 = vmatprep.subr.mxu0 0.0
    %344 = vmatpush1.msra.mxu0 %v100
    %345 = vmatprep.subr.mxu0 0.0
    %346 = vmatpush1.msra.mxu0 %v101
    %347 = vmatprep.subr.mxu0 0.0
    %348 = vmatpush1.msra.mxu0 %v102
    %349 = vmatprep.subr.mxu0 0.0
    %350 = vmatpush1.msra.mxu0 %v103
    %351 = vmatprep.subr.mxu0 0.0
    %352 = vmatpush1.msra.mxu0 %v104
    %353 = vmatprep.subr.mxu0 0.0
    %354 = vmatpush1.msra.mxu0 %v105
    %355 = vmatprep.subr.mxu0 0.0
    %356 = vmatpush1.msra.mxu0 %v106
    %357 = vmatprep.subr.mxu0 0.0
    %358 = vmatpush1.msra.mxu0 %v107
    %359 = vmatprep.subr.mxu0 0.0
    %360 = vmatpush1.msra.mxu0 %v108
    %361 = vmatprep.subr.mxu0 0.0
    %362 = vmatpush1.msra.mxu0 %v109
    %363 = vmatprep.subr.mxu0 0.0
    %364 = vmatpush1.msra.mxu0 %v110
    %365 = vmatprep.subr.mxu0 0.0
    %366 = vmatpush1.msra.mxu0 %v111
    %367 = vmatprep.subr.mxu0 0.0
    %368 = vmatpush1.msra.mxu0 %v112
    %369 = vmatprep.subr.mxu0 0.0
    %370 = vmatpush1.msra.mxu0 %v113
    %371 = vmatprep.subr.mxu0 0.0
    %372 = vmatpush1.msra.mxu0 %v114
    %373 = vmatprep.subr.mxu0 0.0
    %374 = vmatpush1.msra.mxu0 %v115
    %375 = vmatprep.subr.mxu0 0.0
    %376 = vmatpush1.msra.mxu0 %v116
    %377 = vmatprep.subr.mxu0 0.0
    %378 = vmatpush1.msra.mxu0 %v117
    %379 = vmatprep.subr.mxu0 0.0
    %380 = vmatpush1.msra.mxu0 %v118
    %381 = vmatprep.subr.mxu0 0.0
    %382 = vmatpush1.msra.mxu0 %v119
    %383 = vmatprep.subr.mxu0 0.0
    %384 = vmatpush1.msra.mxu0 %v120
    %385 = vmatprep.subr.mxu0 0.0
    %386 = vmatpush1.msra.mxu0 %v121
    %387 = vmatprep.subr.mxu0 0.0
    %388 = vmatpush1.msra.mxu0 %v122
    %389 = vmatprep.subr.mxu0 0.0
    %390 = vmatpush1.msra.mxu0 %v123
    %391 = vmatprep.subr.mxu0 0.0
    %392 = vmatpush1.msra.mxu0 %v124
    %393 = vmatprep.subr.mxu0 0.0
    %394 = vmatpush1.msra.mxu0 %v125
    %395 = vmatprep.subr.mxu0 0.0
    %396 = vmatpush1.msra.mxu0 %v126
    %397 = vmatprep.subr.mxu0 0.0
    %398 = vmatpush1.msra.mxu0 %v127
    %399 = vmatprep.subr.mxu0 0.0
    %400 = vmatpush1.msra.mxu0 %v128
    %401 = vmatprep.subr.mxu0 0.0
    %402 = vmatpush1.msra.mxu0 %v129
    %403 = vmatprep.subr.mxu0 0.0
    %404 = vmatpush1.msra.mxu0 %v130
    %405 = vmatprep.mubr.f32.mxu0 %v46
    %406 = vmatmul.mubr.f32.gmra.mrb[0].mxu0 %v45
    %v407 = vpop.f32.mrb[0].mxu0
    %v408 = vadd.f32 %v333, %v407
    %v409 = vpop.f32.mrb[0].mxu0
    %410 = vmatprep.mubr.f32.mxu0 %v58
    %411 = vmatmul.mubr.f32.gmra.mrb[0].mxu0 %v57
    %v412 = vpop.f32.mrb[0].mxu0
    %v413 = vadd.f32 %v338, %v412
    %v414 = vpop.f32.mrb[0].mxu0
    %415 = vdwg.mxu0
    %416 = vmatprep.subr.mxu0 0.0
    %417 = vmatpush1.msra.mxu0 %v131
    %418 = vmatprep.subr.mxu0 0.0
    %419 = vmatpush1.msra.mxu0 %v132
    %420 = vmatprep.subr.mxu0 0.0
    %421 = vmatpush1.msra.mxu0 %v133
    %422 = vmatprep.subr.mxu0 0.0
    %423 = vmatpush1.msra.mxu0 %v134
    %424 = vmatprep.subr.mxu0 0.0
    %425 = vmatpush1.msra.mxu0 %v135
    %426 = vmatprep.subr.mxu0 0.0
    %427 = vmatpush1.msra.mxu0 %v136
    %428 = vmatprep.subr.mxu0 0.0
    %429 = vmatpush1.msra.mxu0 %v137
    %430 = vmatprep.subr.mxu0 0.0
    %431 = vmatpush1.msra.mxu0 %v138
    %432 = vmatprep.subr.mxu0 0.0
    %433 = vmatpush1.msra.mxu0 %v139
    %434 = vmatprep.subr.mxu0 0.0
    %435 = vmatpush1.msra.mxu0 %v140
    %436 = vmatprep.subr.mxu0 0.0
    %437 = vmatpush1.msra.mxu0 %v141
    %438 = vmatprep.subr.mxu0 0.0
    %439 = vmatpush1.msra.mxu0 %v142
    %440 = vmatprep.subr.mxu0 0.0
    %441 = vmatpush1.msra.mxu0 %v143
    %442 = vmatprep.subr.mxu0 0.0
    %443 = vmatpush1.msra.mxu0 %v144
    %444 = vmatprep.subr.mxu0 0.0
    %445 = vmatpush1.msra.mxu0 %v145
    %446 = vmatprep.subr.mxu0 0.0
    %447 = vmatpush1.msra.mxu0 %v146
    %448 = vmatprep.subr.mxu0 0.0
    %449 = vmatpush1.msra.mxu0 %v147
    %450 = vmatprep.subr.mxu0 0.0
    %451 = vmatpush1.msra.mxu0 %v148
    %452 = vmatprep.subr.mxu0 0.0
    %453 = vmatpush1.msra.mxu0 %v149
    %454 = vmatprep.subr.mxu0 0.0
    %455 = vmatpush1.msra.mxu0 %v150
    %456 = vmatprep.subr.mxu0 0.0
    %457 = vmatpush1.msra.mxu0 %v151
    %458 = vmatprep.subr.mxu0 0.0
    %459 = vmatpush1.msra.mxu0 %v152
    %460 = vmatprep.subr.mxu0 0.0
    %461 = vmatpush1.msra.mxu0 %v153
    %462 = vmatprep.subr.mxu0 0.0
    %463 = vmatpush1.msra.mxu0 %v154
    %464 = vmatprep.subr.mxu0 0.0
    %465 = vmatpush1.msra.mxu0 %v155
    %466 = vmatprep.subr.mxu0 0.0
    %467 = vmatpush1.msra.mxu0 %v156
    %468 = vmatprep.subr.mxu0 0.0
    %469 = vmatpush1.msra.mxu0 %v157
    %470 = vmatprep.subr.mxu0 0.0
    %471 = vmatpush1.msra.mxu0 %v158
    %472 = vmatprep.subr.mxu0 0.0
    %473 = vmatpush1.msra.mxu0 %v159
    %474 = vmatprep.subr.mxu0 0.0
    %475 = vmatpush1.msra.mxu0 %v160
    %476 = vmatprep.subr.mxu0 0.0
    %477 = vmatpush1.msra.mxu0 %v161
    %478 = vmatprep.subr.mxu0 0.0
    %479 = vmatpush1.msra.mxu0 %v162
    %480 = vmatprep.mubr.f32.mxu0 %v48
    %481 = vmatmul.mubr.f32.gmra.mrb[0].mxu0 %v47
    %v482 = vpop.f32.mrb[0].mxu0
    %v483 = vadd.f32 %v408, %v482
    %v484 = vpop.f32.mrb[0].mxu0
    %485 = vmatprep.mubr.f32.mxu0 %v60
    %486 = vmatmul.mubr.f32.gmra.mrb[0].mxu0 %v59
    %v487 = vpop.f32.mrb[0].mxu0
    %v488 = vadd.f32 %v413, %v487
    %v489 = vpop.f32.mrb[0].mxu0
    %490 = vdwg.mxu0
    %491 = vmatprep.subr.mxu0 0.0
    %492 = vmatpush1.msra.mxu0 %v163
    %493 = vmatprep.subr.mxu0 0.0
    %494 = vmatpush1.msra.mxu0 %v164
    %495 = vmatprep.subr.mxu0 0.0
    %496 = vmatpush1.msra.mxu0 %v165
    %497 = vmatprep.subr.mxu0 0.0
    %498 = vmatpush1.msra.mxu0 %v166
    %499 = vmatprep.subr.mxu0 0.0
    %500 = vmatpush1.msra.mxu0 %v167
    %501 = vmatprep.subr.mxu0 0.0
    %502 = vmatpush1.msra.mxu0 %v168
    %503 = vmatprep.subr.mxu0 0.0
    %504 = vmatpush1.msra.mxu0 %v169
    %505 = vmatprep.subr.mxu0 0.0
    %506 = vmatpush1.msra.mxu0 %v170
    %507 = vmatprep.subr.mxu0 0.0
    %508 = vmatpush1.msra.mxu0 %v171
    %509 = vmatprep.subr.mxu0 0.0
    %510 = vmatpush1.msra.mxu0 %v172
    %511 = vmatprep.subr.mxu0 0.0
    %512 = vmatpush1.msra.mxu0 %v173
    %513 = vmatprep.subr.mxu0 0.0
    %514 = vmatpush1.msra.mxu0 %v174
    %515 = vmatprep.subr.mxu0 0.0
    %516 = vmatpush1.msra.mxu0 %v175
    %517 = vmatprep.subr.mxu0 0.0
    %518 = vmatpush1.msra.mxu0 %v176
    %519 = vmatprep.subr.mxu0 0.0
    %520 = vmatpush1.msra.mxu0 %v177
    %521 = vmatprep.subr.mxu0 0.0
    %522 = vmatpush1.msra.mxu0 %v178
    %523 = vmatprep.subr.mxu0 0.0
    %524 = vmatpush1.msra.mxu0 %v179
    %525 = vmatprep.subr.mxu0 0.0
    %526 = vmatpush1.msra.mxu0 %v180
    %527 = vmatprep.subr.mxu0 0.0
    %528 = vmatpush1.msra.mxu0 %v181
    %529 = vmatprep.subr.mxu0 0.0
    %530 = vmatpush1.msra.mxu0 %v182
    %531 = vmatprep.subr.mxu0 0.0
    %532 = vmatpush1.msra.mxu0 %v183
    %533 = vmatprep.subr.mxu0 0.0
    %534 = vmatpush1.msra.mxu0 %v184
    %535 = vmatprep.subr.mxu0 0.0
    %536 = vmatpush1.msra.mxu0 %v185
    %537 = vmatprep.subr.mxu0 0.0
    %538 = vmatpush1.msra.mxu0 %v186
    %539 = vmatprep.subr.mxu0 0.0
    %540 = vmatpush1.msra.mxu0 %v187
    %541 = vmatprep.subr.mxu0 0.0
    %542 = vmatpush1.msra.mxu0 %v188
    %543 = vmatprep.subr.mxu0 0.0
    %544 = vmatpush1.msra.mxu0 %v189
    %545 = vmatprep.subr.mxu0 0.0
    %546 = vmatpush1.msra.mxu0 %v190
    %547 = vmatprep.subr.mxu0 0.0
    %548 = vmatpush1.msra.mxu0 %v191
    %549 = vmatprep.subr.mxu0 0.0
    %550 = vmatpush1.msra.mxu0 %v192
    %551 = vmatprep.subr.mxu0 0.0
    %552 = vmatpush1.msra.mxu0 %v193
    %553 = vmatprep.subr.mxu0 0.0
    %554 = vmatpush1.msra.mxu0 %v194
    %555 = vmatprep.mubr.f32.mxu0 %v50
    %556 = vmatmul.mubr.f32.gmra.mrb[0].mxu0 %v49
    %v557 = vpop.f32.mrb[0].mxu0
    %v558 = vadd.f32 %v483, %v557
    %v559 = vpop.f32.mrb[0].mxu0
    %560 = vmatprep.mubr.f32.mxu0 %v62
    %561 = vmatmul.mubr.f32.gmra.mrb[0].mxu0 %v61
    %v562 = vpop.f32.mrb[0].mxu0
    %v563 = vadd.f32 %v488, %v562
    %v564 = vpop.f32.mrb[0].mxu0
    %565 = vdwg.mxu0
    %566 = vmatprep.subr.mxu0 0.0
    %567 = vmatpush1.msra.mxu0 %v195
    %568 = vmatprep.subr.mxu0 0.0
    %569 = vmatpush1.msra.mxu0 %v196
    %570 = vmatprep.subr.mxu0 0.0
    %571 = vmatpush1.msra.mxu0 %v197
    %572 = vmatprep.subr.mxu0 0.0
    %573 = vmatpush1.msra.mxu0 %v198
    %574 = vmatprep.subr.mxu0 0.0
    %575 = vmatpush1.msra.mxu0 %v199
    %576 = vmatprep.subr.mxu0 0.0
    %577 = vmatpush1.msra.mxu0 %v200
    %578 = vmatprep.subr.mxu0 0.0
    %579 = vmatpush1.msra.mxu0 %v201
    %580 = vmatprep.subr.mxu0 0.0
    %581 = vmatpush1.msra.mxu0 %v202
    %582 = vmatprep.subr.mxu0 0.0
    %583 = vmatpush1.msra.mxu0 %v203
    %584 = vmatprep.subr.mxu0 0.0
    %585 = vmatpush1.msra.mxu0 %v204
    %586 = vmatprep.subr.mxu0 0.0
    %587 = vmatpush1.msra.mxu0 %v205
    %588 = vmatprep.subr.mxu0 0.0
    %589 = vmatpush1.msra.mxu0 %v206
    %590 = vmatprep.subr.mxu0 0.0
    %591 = vmatpush1.msra.mxu0 %v207
    %592 = vmatprep.subr.mxu0 0.0
    %593 = vmatpush1.msra.mxu0 %v208
    %594 = vmatprep.subr.mxu0 0.0
    %595 = vmatpush1.msra.mxu0 %v209
    %596 = vmatprep.subr.mxu0 0.0
    %597 = vmatpush1.msra.mxu0 %v210
    %598 = vmatprep.subr.mxu0 0.0
    %599 = vmatpush1.msra.mxu0 %v211
    %600 = vmatprep.subr.mxu0 0.0
    %601 = vmatpush1.msra.mxu0 %v212
    %602 = vmatprep.subr.mxu0 0.0
    %603 = vmatpush1.msra.mxu0 %v213
    %604 = vmatprep.subr.mxu0 0.0
    %605 = vmatpush1.msra.mxu0 %v214
    %606 = vmatprep.subr.mxu0 0.0
    %607 = vmatpush1.msra.mxu0 %v215
    %608 = vmatprep.subr.mxu0 0.0
    %609 = vmatpush1.msra.mxu0 %v216
    %610 = vmatprep.subr.mxu0 0.0
    %611 = vmatpush1.msra.mxu0 %v217
    %612 = vmatprep.subr.mxu0 0.0
    %613 = vmatpush1.msra.mxu0 %v218
    %614 = vmatprep.subr.mxu0 0.0
    %615 = vmatpush1.msra.mxu0 %v219
    %616 = vmatprep.subr.mxu0 0.0
    %617 = vmatpush1.msra.mxu0 %v220
    %618 = vmatprep.subr.mxu0 0.0
    %619 = vmatpush1.msra.mxu0 %v221
    %620 = vmatprep.subr.mxu0 0.0
    %621 = vmatpush1.msra.mxu0 %v222
    %622 = vmatprep.subr.mxu0 0.0
    %623 = vmatpush1.msra.mxu0 %v223
    %624 = vmatprep.subr.mxu0 0.0
    %625 = vmatpush1.msra.mxu0 %v224
    %626 = vmatprep.subr.mxu0 0.0
    %627 = vmatpush1.msra.mxu0 %v225
    %628 = vmatprep.subr.mxu0 0.0
    %629 = vmatpush1.msra.mxu0 %v226
    %630 = vmatprep.mubr.f32.mxu0 %v52
    %631 = vmatmul.mubr.f32.gmra.mrb[0].mxu0 %v51
    %v632 = vpop.f32.mrb[0].mxu0
    %v633 = vadd.f32 %v558, %v632
    %v634 = vpop.f32.mrb[0].mxu0
    %635 = vmatprep.mubr.f32.mxu0 %v64
    %636 = vmatmul.mubr.f32.gmra.mrb[0].mxu0 %v63
    %v637 = vpop.f32.mrb[0].mxu0
    %v638 = vadd.f32 %v563, %v637
    %v639 = vpop.f32.mrb[0].mxu0
    %640 = vdwg.mxu0
    %641 = vmatprep.subr.mxu0 0.0
    %642 = vmatpush1.msra.mxu0 %v227
    %643 = vmatprep.subr.mxu0 0.0
    %644 = vmatpush1.msra.mxu0 %v228
    %645 = vmatprep.subr.mxu0 0.0
    %646 = vmatpush1.msra.mxu0 %v229
    %647 = vmatprep.subr.mxu0 0.0
    %648 = vmatpush1.msra.mxu0 %v230
    %649 = vmatprep.subr.mxu0 0.0
    %650 = vmatpush1.msra.mxu0 %v231
    %651 = vmatprep.subr.mxu0 0.0
    %652 = vmatpush1.msra.mxu0 %v232
    %653 = vmatprep.subr.mxu0 0.0
    %654 = vmatpush1.msra.mxu0 %v233
    %655 = vmatprep.subr.mxu0 0.0
    %656 = vmatpush1.msra.mxu0 %v234
    %657 = vmatprep.subr.mxu0 0.0
    %658 = vmatpush1.msra.mxu0 %v235
    %659 = vmatprep.subr.mxu0 0.0
    %660 = vmatpush1.msra.mxu0 %v236
    %661 = vmatprep.subr.mxu0 0.0
    %662 = vmatpush1.msra.mxu0 %v237
    %663 = vmatprep.subr.mxu0 0.0
    %664 = vmatpush1.msra.mxu0 %v238
    %665 = vmatprep.subr.mxu0 0.0
    %666 = vmatpush1.msra.mxu0 %v239
    %667 = vmatprep.subr.mxu0 0.0
    %668 = vmatpush1.msra.mxu0 %v240
    %669 = vmatprep.subr.mxu0 0.0
    %670 = vmatpush1.msra.mxu0 %v241
    %671 = vmatprep.subr.mxu0 0.0
    %672 = vmatpush1.msra.mxu0 %v242
    %673 = vmatprep.subr.mxu0 0.0
    %674 = vmatpush1.msra.mxu0 %v243
    %675 = vmatprep.subr.mxu0 0.0
    %676 = vmatpush1.msra.mxu0 %v244
    %677 = vmatprep.subr.mxu0 0.0
    %678 = vmatpush1.msra.mxu0 %v245
    %679 = vmatprep.subr.mxu0 0.0
    %680 = vmatpush1.msra.mxu0 %v246
    %681 = vmatprep.subr.mxu0 0.0
    %682 = vmatpush1.msra.mxu0 %v247
    %683 = vmatprep.subr.mxu0 0.0
    %684 = vmatpush1.msra.mxu0 %v248
    %685 = vmatprep.subr.mxu0 0.0
    %686 = vmatpush1.msra.mxu0 %v249
    %687 = vmatprep.subr.mxu0 0.0
    %688 = vmatpush1.msra.mxu0 %v250
    %689 = vmatprep.subr.mxu0 0.0
    %690 = vmatpush1.msra.mxu0 %v251
    %691 = vmatprep.subr.mxu0 0.0
    %692 = vmatpush1.msra.mxu0 %v252
    %693 = vmatprep.subr.mxu0 0.0
    %694 = vmatpush1.msra.mxu0 %v253
    %695 = vmatprep.subr.mxu0 0.0
    %696 = vmatpush1.msra.mxu0 %v254
    %697 = vmatprep.subr.mxu0 0.0
    %698 = vmatpush1.msra.mxu0 %v255
    %699 = vmatprep.subr.mxu0 0.0
    %700 = vmatpush1.msra.mxu0 %v256
    %701 = vmatprep.subr.mxu0 0.0
    %702 = vmatpush1.msra.mxu0 %v257
    %703 = vmatprep.subr.mxu0 0.0
    %704 = vmatpush1.msra.mxu0 %v258
    %705 = vmatprep.mubr.f32.mxu0 %v54
    %706 = vmatmul.mubr.f32.gmra.mrb[0].mxu0 %v53
    %v707 = vpop.f32.mrb[0].mxu0
    %v708 = vadd.f32 %v633, %v707
    %v709 = vpop.f32.mrb[0].mxu0
    %710 = vmatprep.mubr.f32.mxu0 %v66
    %711 = vmatmul.mubr.f32.gmra.mrb[0].mxu0 %v65
    %v712 = vpop.f32.mrb[0].mxu0
    %v713 = vadd.f32 %v638, %v712
    %v714 = vpop.f32.mrb[0].mxu0
    %715 = vdwg.mxu0
    %716 = vst [vmem:[#allocation7] sm:$0xff] %v708
    %717 = vst [vmem:[#allocation7 + $0x8] sm:$0xff] %v713
    // Predicated region
    $region22: #{tpu_custom_call.1} parent=1 // pred_check
      _
    $region23: #{tpu_custom_call.1} parent=1 // pred_check_branch
      %719 = sbr.rel (0) target = $region25
    $region24: #{tpu_custom_call.1} parent=1 // pred_region
      %s721 = ssub.s32 256, 256
      %722 = vsyncadd [#allocation4], %s721
      %s723 = sshll.u32 [#allocation7], 4
      %s724 = int_to_ptr.vmem [resolvable:$true] %s723
      %729 = dma.vmem_to_hbm [thread:$0]  %s724, 256, %s3, [#allocation4], 128, 128, 8
    $region25: #{tpu_custom_call.1} parent=1 // pred_fallthru
      _
    // Predicated region
    $region26: #{tpu_custom_call.1} parent=1 // pred_check
      _
    $region27: #{tpu_custom_call.1} parent=1 // pred_check_branch
      %731 = sbr.rel (0) target = $region29
    $region28: #{tpu_custom_call.1} parent=1 // pred_region
      %732 = dma.done [#allocation4], 256
    $region29: #{tpu_custom_call.1} parent=1 // pred_fallthru
      _
    %733 = vsyncpa [#allocation3], 1
    %734 = vsyncpa [#allocation6], 1
    %735 = vsyncpa [#allocation4], 1

</llo_original>
